<compile_context>
chip_gen: v7x
topology: tpu7x:2x2x1
jax: 0.10.0
libtpu: 0.0.40
codegen_flags: <defaults>
</compile_context>

<pallas_src>
import functools
import math

import jax
import jax.numpy as jnp
from jax import lax
from jax.experimental import pallas as pl
from jax.experimental.pallas import tpu as pltpu


def _round_up(x, m):
    return (x + m - 1) // m * m


# 2-D dot_general dimension numbers (no batch dims).
_NT = (((1,), (1,)), ((), ()))   # a (m,k) . b (n,k) -> (m,n)
_NN = (((1,), (0,)), ((), ()))   # a (m,k) . b (k,n) -> (m,n)
_TN = (((0,), (0,)), ((), ()))   # a (k,m) . b (k,n) -> (m,n)


def _mlp_kernel(x_ref, *refs, n_layers, chunk, n_chunks, compute_dtype):
    """Whole MLP forward for one batch tile.

    x_ref   : (bm, n_in) f32 block of x in its native (batch, features) layout.
    refs    : w0, b0, w1, b1, ..., w_{L-1}, b_{L-1}, out_ref
              layer 0       : w (h1_pad, n_in)   compute dtype, b (h1_pad, 1) f32
              layers 1..L-2 : w (fo_pad, fi_pad) compute dtype, b (fo_pad, 1) f32
              layer L-1     : w (fi_pad, n_out)  pre-transposed, b (1, n_out) f32
    out_ref : (bm, n_out) block, native (batch, features) layout.

    The batch tile is processed in n_chunks sub-chunks of `chunk` rows so the
    BlockSpec DMA tile can be large while vreg pressure stays small.  Hidden
    activations live in the lane-dense (features, batch) orientation; NT / TN
    dimension numbers on the first / last matmuls avoid explicit transposes.
    """
    out_ref = refs[-1]
    prm = refs[:-1]

    def chunk_body(c, carry):
        off = pl.multiple_of(c * chunk, chunk)
        xc = x_ref[pl.ds(off, chunk), :].astype(compute_dtype)   # (chunk, n_in)

        # Layer 0:  W0 . x^T  (NT) -> (h1_pad, chunk), f32 accumulation.
        acc = lax.dot_general(prm[0][...], xc, _NT,
                              preferred_element_type=jnp.float32) + prm[1][...]
        h = jnp.maximum(acc, 0.0).astype(compute_dtype)

        # Hidden layers:  W . h  (NN) -> (fo_pad, chunk).
        for li in range(1, n_layers - 1):
            acc = lax.dot_general(prm[2 * li][...], h, _NN,
                                  preferred_element_type=jnp.float32)
            acc = acc + prm[2 * li + 1][...]
            h = jnp.maximum(acc, 0.0).astype(compute_dtype)

        # Output layer:  h^T . W_L^T  (TN) -> (chunk, n_out); no ReLU.
        out_c = lax.dot_general(h, prm[2 * (n_layers - 1)][...], _TN,
                                preferred_element_type=jnp.float32)
        out_c = out_c + prm[2 * (n_layers - 1) + 1][...]
        out_ref[pl.ds(off, chunk), :] = out_c.astype(out_ref.dtype)
        return carry

    lax.fori_loop(0, n_chunks, chunk_body, 0)


def prepare_params(weights, biases, compute_dtype=jnp.bfloat16):
    """Pad / cast / re-orient the Linear parameters ONCE (hoisted out of forward).

    weights: list of (out_features, in_features) f32 arrays (PyTorch layout).
    biases:  list of (out_features,) f32 arrays.
    """
    n_layers = len(weights)
    assert n_layers >= 2, "linear_relu_stack always has >= 2 Linear layers"
    compute_dtype = jnp.dtype(compute_dtype)
    sub = 16 if compute_dtype.itemsize < 4 else 8     # bf16 packs 2 rows/sublane

    n_in = weights[0].shape[1]
    n_out = weights[-1].shape[0]
    dims = [n_in] + [w.shape[0] for w in weights]
    # Input / output dims stay exact (lane dims / exact contraction dims);
    # hidden dims are padded to the dtype's sublane multiple.
    pdims = [n_in] + [_round_up(d, sub) for d in dims[1:-1]] + [n_out]

    flat = []
    for li, (w, b) in enumerate(zip(weights, biases)):
        o, i = w.shape
        pi, po = pdims[li], pdims[li + 1]
        if li == n_layers - 1:
            # Final layer stored transposed (fi_pad, n_out); row bias (1, n_out).
            wp = jnp.zeros((pi, o), compute_dtype).at[:i, :].set(
                w.astype(compute_dtype).T)
            bp = b.astype(jnp.float32).reshape(1, o)
        else:
            wp = jnp.zeros((po, pi), compute_dtype).at[:o, :i].set(
                w.astype(compute_dtype))
            bp = jnp.zeros((po, 1), jnp.float32).at[:o, 0].set(
                b.astype(jnp.float32))
        flat += [wp, bp]

    return dict(flat=tuple(flat), dims=tuple(dims), pdims=tuple(pdims),
                compute_dtype=compute_dtype)


def mlp_forward(x, params, *, block_batch=4096, chunk=256,
                out_dtype=jnp.float32):
    """Forward pass of the linear_relu_stack network with one pallas_call.

    x      : (B, n_inputs) array (any float dtype; cast to f32 like the module).
    params : output of prepare_params().
    Returns (B, n_outputs) in out_dtype (default f32, matching PyTorch).
    """
    flat = params["flat"]
    dims = params["dims"]
    pdims = params["pdims"]
    compute_dtype = params["compute_dtype"]
    n_layers = len(flat) // 2
    n_in, n_out = dims[0], dims[-1]

    squeeze = (x.ndim == 1)
    if squeeze:
        x = x[None, :]
    if x.dtype != jnp.float32:          # mirror NeuralNetwork.forward's x.float()
        x = x.astype(jnp.float32)
    B = x.shape[0]
    assert x.shape[1] == n_in

    # --- batch tiling: large DMA tile, >=2 grid steps for big batches (v7x) ---
    B_lane = _round_up(B, 128)
    bm = min(_round_up(block_batch, 128), B_lane)
    if B_lane >= 256:                   # enough rows to split across 2 TCs
        bm = min(bm, _round_up(pl.cdiv(B, 2), 128))
    bm = max(bm, 128)
    ck = max(128, min(_round_up(chunk, 128), bm))
    while bm % ck:                      # inner chunk must tile the batch block
        ck -= 128
    n_chunks = bm // ck
    grid = (pl.cdiv(B, bm),)

    in_specs = [pl.BlockSpec((bm, n_in), lambda i: (i, 0))]
    for p in flat:
        # Tiny constant-index params: full tensor every step (no re-DMA needed
        # once resident since the block index never changes).
        in_specs.append(pl.BlockSpec(p.shape, lambda i: (0, 0)))

    kernel = functools.partial(
        _mlp_kernel, n_layers=n_layers, chunk=ck, n_chunks=n_chunks,
        compute_dtype=compute_dtype)

    flops = 2 * grid[0] * bm * sum(a * b for a, b in zip(pdims[:-1], pdims[1:]))
    param_bytes = sum(p.size * p.dtype.itemsize for p in flat)
    bytes_accessed = (B * n_in * 4
                      + B * n_out * jnp.dtype(out_dtype).itemsize
                      + param_bytes)
    cost = pl.CostEstimate(flops=int(flops), transcendentals=0,
                           bytes_accessed=int(bytes_accessed))

    out = pl.pallas_call(
        kernel,
        out_shape=jax.ShapeDtypeStruct((B, n_out), out_dtype),
        grid=grid,
        in_specs=in_specs,
        out_specs=pl.BlockSpec((bm, n_out), lambda i: (i, 0)),
        compiler_params=pltpu.CompilerParams(
            dimension_semantics=("parallel",)),
        cost_estimate=cost,
    )(x, *flat)

    return out[0] if squeeze else out


def init_linear_relu_stack_params(key, n_inputs, n_hidden, n_outputs):
    """Deterministic init matching linear_relu_stack layer shapes.

    PyTorch nn.Linear default init: U(-k, k) with k = 1/sqrt(fan_in).
    Weights are returned in PyTorch (out_features, in_features) orientation.
    """
    hidden_size = int((n_inputs + n_outputs) / 2)
    dims = [n_inputs, hidden_size] + [hidden_size] * n_hidden + [n_outputs]

    weights, biases = [], []
    for fan_in, fan_out in zip(dims[:-1], dims[1:]):
        key, kw, kb = jax.random.split(key, 3)
        k = 1.0 / math.sqrt(fan_in)
        w = jax.random.uniform(kw, (fan_out, fan_in), jnp.float32, -k, k)
        b = jax.random.uniform(kb, (fan_out,), jnp.float32, -k, k)
        weights.append(w)
        biases.append(b)
    return weights, biases


def reference_forward(x, weights, biases, compute_dtype=jnp.float32):
    """Pure-JAX reference mirroring the kernel's dtype policy."""
    h = x.astype(compute_dtype)
    n = len(weights)
    for i, (w, b) in enumerate(zip(weights, biases)):
        acc = jnp.dot(h, w.astype(compute_dtype).T,
                      preferred_element_type=jnp.float32) + b.astype(jnp.float32)
        if i < n - 1:
            h = jnp.maximum(acc, 0.0).astype(compute_dtype)
        else:
            h = acc
    return h


# TODO(synk): evolutionary utilities (mutate_gaussian*, copy, replace_layers,
# save_model, fitness bookkeeping) are host-side PyTorch object management and
# are intentionally not translated; only forward() is implemented here.

if __name__ == "__main__":
    # Module config: NeuralNetwork(n_inputs=32, n_outputs=8, n_hidden=2)
    n_inputs, n_outputs, n_hidden = 32, 8, 2
    batch = 8

    key = jax.random.PRNGKey(0)
    key, kx = jax.random.split(key)
    x = jax.random.normal(kx, (batch, n_inputs), jnp.float32)

    weights, biases = init_linear_relu_stack_params(
        key, n_inputs, n_hidden, n_outputs)

    # --- f32 compute path: exact PyTorch forward semantics ------------------
    params_f32 = prepare_params(weights, biases, compute_dtype=jnp.float32)
    out_f32 = jax.block_until_ready(mlp_forward(x, params_f32))
    assert out_f32.shape == (batch, n_outputs)
    assert out_f32.dtype == jnp.float32
    ref_f32 = reference_forward(x, weights, biases, jnp.float32)
    assert jnp.allclose(out_f32, ref_f32, atol=1e-4, rtol=1e-4)

    # --- default bf16 streaming path (params prepared once, reused) ---------
    params_bf16 = prepare_params(weights, biases, compute_dtype=jnp.bfloat16)
    out_bf16 = jax.block_until_ready(mlp_forward(x, params_bf16))
    ref_bf16 = reference_forward(x, weights, biases, jnp.bfloat16)
    assert jnp.allclose(out_bf16, ref_bf16, atol=1e-3, rtol=1e-3)

    # --- non-divisible batch: 2 grid steps (v7x megacore path), masked tail -
    key, kx2 = jax.random.split(key)
    x_mid = jax.random.normal(kx2, (384, n_inputs), jnp.float32)
    out_mid = jax.block_until_ready(mlp_forward(x_mid, params_bf16))
    ref_mid = reference_forward(x_mid, weights, biases, jnp.bfloat16)
    assert out_mid.shape == (384, n_outputs)
    assert jnp.allclose(out_mid, ref_mid, atol=1e-3, rtol=1e-3)

    # --- larger batch: multi-step grid AND multi-chunk inner loop -----------
    key, kx3 = jax.random.split(key)
    x_big = jax.random.normal(kx3, (1024, n_inputs), jnp.float32)
    out_big = jax.block_until_ready(mlp_forward(x_big, params_bf16))
    ref_big = reference_forward(x_big, weights, biases, jnp.bfloat16)
    assert out_big.shape == (1024, n_outputs)
    assert jnp.allclose(out_big, ref_big, atol=1e-3, rtol=1e-3)

    print("KERNEL_OK")
</pallas_src>

<mosaic_0001>
module attributes {stable_mosaic.version = 11 : i64} {
  func.func @_mlp_kernel(%arg0: i32, %arg1: memref<128x32xf32, #tpu.memory_space<vmem>>, %arg2: memref<24x32xf32, #tpu.memory_space<vmem>>, %arg3: memref<24x1xf32, #tpu.memory_space<vmem>>, %arg4: memref<24x24xf32, #tpu.memory_space<vmem>>, %arg5: memref<24x1xf32, #tpu.memory_space<vmem>>, %arg6: memref<24x24xf32, #tpu.memory_space<vmem>>, %arg7: memref<24x1xf32, #tpu.memory_space<vmem>>, %arg8: memref<24x8xf32, #tpu.memory_space<vmem>>, %arg9: memref<1x8xf32, #tpu.memory_space<vmem>>, %arg10: memref<128x8xf32, #tpu.memory_space<vmem>>) attributes {dimension_semantics = [#tpu.dimension_semantics<parallel>], iteration_bounds = array<i64: 1>, scalar_prefetch = 0 : i64, scratch_operands = 0 : i64, tpu.core_type = #tpu.core_type<tc>, window_params = [{transform_indices = @transform_0, window_bounds = array<i64: 128, 32>}, {pipeline_mode = #tpu.pipeline_mode<synchronous>, transform_indices = @transform_1, window_bounds = array<i64: 24, 32>}, {pipeline_mode = #tpu.pipeline_mode<synchronous>, transform_indices = @transform_2, window_bounds = array<i64: 24, 1>}, {pipeline_mode = #tpu.pipeline_mode<synchronous>, transform_indices = @transform_3, window_bounds = array<i64: 24, 24>}, {pipeline_mode = #tpu.pipeline_mode<synchronous>, transform_indices = @transform_4, window_bounds = array<i64: 24, 1>}, {pipeline_mode = #tpu.pipeline_mode<synchronous>, transform_indices = @transform_5, window_bounds = array<i64: 24, 24>}, {pipeline_mode = #tpu.pipeline_mode<synchronous>, transform_indices = @transform_6, window_bounds = array<i64: 24, 1>}, {pipeline_mode = #tpu.pipeline_mode<synchronous>, transform_indices = @transform_7, window_bounds = array<i64: 24, 8>}, {pipeline_mode = #tpu.pipeline_mode<synchronous>, transform_indices = @transform_8, window_bounds = array<i64: 1, 8>}, {transform_indices = @transform_9, window_bounds = array<i64: 128, 8>}]} {
    %c0_i32 = arith.constant 0 : i32
    %c128_i32 = arith.constant 128 : i32
    %0 = arith.muli %c0_i32, %c128_i32 : i32
    %1 = tpu.assume_multiple %0, 128 : i32
    %2 = arith.index_cast %1 : i32 to index
    %c0 = arith.constant 0 : index
    %3 = vector.load %arg1[%2, %c0] : memref<128x32xf32, #tpu.memory_space<vmem>>, vector<128x32xf32>
    %c0_0 = arith.constant 0 : index
    %c0_1 = arith.constant 0 : index
    %4 = vector.load %arg2[%c0_0, %c0_1] : memref<24x32xf32, #tpu.memory_space<vmem>>, vector<24x32xf32>
    %cst = arith.constant dense<0.000000e+00> : vector<24x128xf32>
    %5 = tpu.matmul %4, %3, %cst {dimension_numbers = #tpu.dot_dimension_numbers<[1], [1], [0], [0], [0, 0, 1, 0], [], []>} : vector<24x32xf32>, vector<128x32xf32>, vector<24x128xf32> -> vector<24x128xf32>
    %c0_2 = arith.constant 0 : index
    %c0_3 = arith.constant 0 : index
    %6 = vector.load %arg3[%c0_2, %c0_3] : memref<24x1xf32, #tpu.memory_space<vmem>>, vector<24x1xf32>
    %7 = vector.broadcast %6 : vector<24x1xf32> to vector<24x128xf32>
    %8 = arith.addf %5, %7 : vector<24x128xf32>
    %cst_4 = arith.constant 0.000000e+00 : f32
    %9 = vector.broadcast %cst_4 : f32 to vector<24x128xf32>
    %10 = arith.maximumf %8, %9 : vector<24x128xf32>
    %c0_5 = arith.constant 0 : index
    %c0_6 = arith.constant 0 : index
    %11 = vector.load %arg4[%c0_5, %c0_6] : memref<24x24xf32, #tpu.memory_space<vmem>>, vector<24x24xf32>
    %cst_7 = arith.constant dense<0.000000e+00> : vector<24x128xf32>
    %12 = tpu.matmul %11, %10, %cst_7 {dimension_numbers = #tpu.dot_dimension_numbers<[1], [0], [0], [1], [0, 0, 1, 1], [], []>} : vector<24x24xf32>, vector<24x128xf32>, vector<24x128xf32> -> vector<24x128xf32>
    %c0_8 = arith.constant 0 : index
    %c0_9 = arith.constant 0 : index
    %13 = vector.load %arg5[%c0_8, %c0_9] : memref<24x1xf32, #tpu.memory_space<vmem>>, vector<24x1xf32>
    %14 = vector.broadcast %13 : vector<24x1xf32> to vector<24x128xf32>
    %15 = arith.addf %12, %14 : vector<24x128xf32>
    %cst_10 = arith.constant 0.000000e+00 : f32
    %16 = vector.broadcast %cst_10 : f32 to vector<24x128xf32>
    %17 = arith.maximumf %15, %16 : vector<24x128xf32>
    %c0_11 = arith.constant 0 : index
    %c0_12 = arith.constant 0 : index
    %18 = vector.load %arg6[%c0_11, %c0_12] : memref<24x24xf32, #tpu.memory_space<vmem>>, vector<24x24xf32>
    %cst_13 = arith.constant dense<0.000000e+00> : vector<24x128xf32>
    %19 = tpu.matmul %18, %17, %cst_13 {dimension_numbers = #tpu.dot_dimension_numbers<[1], [0], [0], [1], [0, 0, 1, 1], [], []>} : vector<24x24xf32>, vector<24x128xf32>, vector<24x128xf32> -> vector<24x128xf32>
    %c0_14 = arith.constant 0 : index
    %c0_15 = arith.constant 0 : index
    %20 = vector.load %arg7[%c0_14, %c0_15] : memref<24x1xf32, #tpu.memory_space<vmem>>, vector<24x1xf32>
    %21 = vector.broadcast %20 : vector<24x1xf32> to vector<24x128xf32>
    %22 = arith.addf %19, %21 : vector<24x128xf32>
    %cst_16 = arith.constant 0.000000e+00 : f32
    %23 = vector.broadcast %cst_16 : f32 to vector<24x128xf32>
    %24 = arith.maximumf %22, %23 : vector<24x128xf32>
    %c0_17 = arith.constant 0 : index
    %c0_18 = arith.constant 0 : index
    %25 = vector.load %arg8[%c0_17, %c0_18] : memref<24x8xf32, #tpu.memory_space<vmem>>, vector<24x8xf32>
    %cst_19 = arith.constant dense<0.000000e+00> : vector<128x8xf32>
    %26 = tpu.matmul %24, %25, %cst_19 {dimension_numbers = #tpu.dot_dimension_numbers<[0], [0], [1], [1], [0, 1, 1, 1], [], []>} : vector<24x128xf32>, vector<24x8xf32>, vector<128x8xf32> -> vector<128x8xf32>
    %c0_20 = arith.constant 0 : index
    %c0_21 = arith.constant 0 : index
    %27 = vector.load %arg9[%c0_20, %c0_21] : memref<1x8xf32, #tpu.memory_space<vmem>>, vector<1x8xf32>
    %28 = vector.broadcast %27 : vector<1x8xf32> to vector<128x8xf32>
    %29 = arith.addf %26, %28 : vector<128x8xf32>
    %30 = arith.index_cast %1 : i32 to index
    %c0_22 = arith.constant 0 : index
    %31 = vector.load %arg10[%30, %c0_22] : memref<128x8xf32, #tpu.memory_space<vmem>>, vector<128x8xf32>
    tpu.vector_store %arg10[%30, %c0_22], %29 {strides = array<i32>} : memref<128x8xf32, #tpu.memory_space<vmem>>, vector<128x8xf32>,
    %c1_i32 = arith.constant 1 : i32
    return
  }
  func.func @transform_0(%arg0: i32) -> (i32, i32) {
    %c0_i32 = arith.constant 0 : i32
    %c0_i32_0 = arith.constant 0 : i32
    return %arg0, %c0_i32 : i32, i32
  }
  func.func @transform_1(%arg0: i32) -> (i32, i32) {
    %c0_i32 = arith.constant 0 : i32
    %c0_i32_0 = arith.constant 0 : i32
    %c0_i32_1 = arith.constant 0 : i32
    return %c0_i32, %c0_i32_0 : i32, i32
  }
  func.func @transform_2(%arg0: i32) -> (i32, i32) {
    %c0_i32 = arith.constant 0 : i32
    %c0_i32_0 = arith.constant 0 : i32
    %c0_i32_1 = arith.constant 0 : i32
    return %c0_i32, %c0_i32_0 : i32, i32
  }
  func.func @transform_3(%arg0: i32) -> (i32, i32) {
    %c0_i32 = arith.constant 0 : i32
    %c0_i32_0 = arith.constant 0 : i32
    %c0_i32_1 = arith.constant 0 : i32
    return %c0_i32, %c0_i32_0 : i32, i32
  }
  func.func @transform_4(%arg0: i32) -> (i32, i32) {
    %c0_i32 = arith.constant 0 : i32
    %c0_i32_0 = arith.constant 0 : i32
    %c0_i32_1 = arith.constant 0 : i32
    return %c0_i32, %c0_i32_0 : i32, i32
  }
  func.func @transform_5(%arg0: i32) -> (i32, i32) {
    %c0_i32 = arith.constant 0 : i32
    %c0_i32_0 = arith.constant 0 : i32
    %c0_i32_1 = arith.constant 0 : i32
    return %c0_i32, %c0_i32_0 : i32, i32
  }
  func.func @transform_6(%arg0: i32) -> (i32, i32) {
    %c0_i32 = arith.constant 0 : i32
    %c0_i32_0 = arith.constant 0 : i32
    %c0_i32_1 = arith.constant 0 : i32
    return %c0_i32, %c0_i32_0 : i32, i32
  }
  func.func @transform_7(%arg0: i32) -> (i32, i32) {
    %c0_i32 = arith.constant 0 : i32
    %c0_i32_0 = arith.constant 0 : i32
    %c0_i32_1 = arith.constant 0 : i32
    return %c0_i32, %c0_i32_0 : i32, i32
  }
  func.func @transform_8(%arg0: i32) -> (i32, i32) {
    %c0_i32 = arith.constant 0 : i32
    %c0_i32_0 = arith.constant 0 : i32
    %c0_i32_1 = arith.constant 0 : i32
    return %c0_i32, %c0_i32_0 : i32, i32
  }
  func.func @transform_9(%arg0: i32) -> (i32, i32) {
    %c0_i32 = arith.constant 0 : i32
    %c0_i32_0 = arith.constant 0 : i32
    return %arg0, %c0_i32 : i32, i32
  }
}

</mosaic_0001>

<llo_original>
// kernel: tpu_custom_call.1
$region0: #{tpu_custom_call.1}
  #allocation0 [shape = 'u32[]', space=smem, size = 0x4, offset = 0x4, fixed_abs, tag = 'smem constant byte address 0x4 - core index']
  #allocation1 [shape = 'u32[144,128]{1,0:T(1,128)}', space=vmem, size = 0x12000, scoped, tag = 'internal scratch']
  %s0 = inlined_call_operand.vmem [shape: f32[8,32], index: 0, kind: input, shape index: {}]
  %s1 = inlined_call_operand.vmem [shape: f32[24,32], index: 1, kind: input, shape index: {}]
  %s2 = inlined_call_operand.vmem [shape: f32[24,1], index: 2, kind: input, shape index: {}]
  %s3 = inlined_call_operand.vmem [shape: f32[24,24], index: 3, kind: input, shape index: {}]
  %s4 = inlined_call_operand.vmem [shape: f32[24,1], index: 4, kind: input, shape index: {}]
  %s5 = inlined_call_operand.vmem [shape: f32[24,24], index: 5, kind: input, shape index: {}]
  %s6 = inlined_call_operand.vmem [shape: f32[24,1], index: 6, kind: input, shape index: {}]
  %s7 = inlined_call_operand.vmem [shape: f32[24,8], index: 7, kind: input, shape index: {}]
  %s8 = inlined_call_operand.vmem [shape: f32[1,8], index: 8, kind: input, shape index: {}]
  %s9 = inlined_call_operand.hbm [shape: f32[8,8], index: 9, kind: output, shape index: {}]
  %s10 = sld [smem:[#allocation0]]
  $region46: #{tpu_custom_call.1} parent=0
    _
  %s12 = ssub.s32 1, %s10
  %s13 = scalar_select 0, %s12, %s10
  $region1: #{tpu_custom_call.1} parent=0
    #allocation2 [shape = 'u8[65536]{0}', space=vmem, size = 0x10000, scoped, tag = 'output window, operand 0, single buffered']
    #allocation3 [shape = 's32[1]{0}', space=sflag, size = 0x4, scoped, tag = 'scoped memory for tpu_custom_call.1']
    %14 = vsyncpa [#allocation3], 0
    // Predicated region
    $region2: #{tpu_custom_call.1} parent=1 // pred_check
      _
    $region3: #{tpu_custom_call.1} parent=1 // pred_check_branch
      %16 = sbr.rel (0) target = $region5
    $region4: #{tpu_custom_call.1} parent=1 // pred_region
      _
    $region5: #{tpu_custom_call.1} parent=1 // pred_fallthru
      _
    // Predicated region
    $region6: #{tpu_custom_call.1} parent=1 // pred_check
      _
    $region7: #{tpu_custom_call.1} parent=1 // pred_check_branch
      %18 = sbr.rel (0) target = $region9
    $region8: #{tpu_custom_call.1} parent=1 // pred_region
      _
    $region9: #{tpu_custom_call.1} parent=1 // pred_fallthru
      _
    // Predicated region
    $region10: #{tpu_custom_call.1} parent=1 // pred_check
      _
    $region11: #{tpu_custom_call.1} parent=1 // pred_check_branch
      %20 = sbr.rel (0) target = $region13
    $region12: #{tpu_custom_call.1} parent=1 // pred_region
      _
    $region13: #{tpu_custom_call.1} parent=1 // pred_fallthru
      _
    // Predicated region
    $region14: #{tpu_custom_call.1} parent=1 // pred_check
      _
    $region15: #{tpu_custom_call.1} parent=1 // pred_check_branch
      %22 = sbr.rel (0) target = $region17
    $region16: #{tpu_custom_call.1} parent=1 // pred_region
      _
    $region17: #{tpu_custom_call.1} parent=1 // pred_fallthru
      _
    // Predicated region
    $region18: #{tpu_custom_call.1} parent=1 // pred_check
      _
    $region19: #{tpu_custom_call.1} parent=1 // pred_check_branch
      %24 = sbr.rel (0) target = $region21
    $region20: #{tpu_custom_call.1} parent=1 // pred_region
      _
    $region21: #{tpu_custom_call.1} parent=1 // pred_fallthru
      _
    // Predicated region
    $region22: #{tpu_custom_call.1} parent=1 // pred_check
      _
    $region23: #{tpu_custom_call.1} parent=1 // pred_check_branch
      %26 = sbr.rel (0) target = $region25
    $region24: #{tpu_custom_call.1} parent=1 // pred_region
      _
    $region25: #{tpu_custom_call.1} parent=1 // pred_fallthru
      _
    // Predicated region
    $region26: #{tpu_custom_call.1} parent=1 // pred_check
      _
    $region27: #{tpu_custom_call.1} parent=1 // pred_check_branch
      %28 = sbr.rel (0) target = $region29
    $region28: #{tpu_custom_call.1} parent=1 // pred_region
      _
    $region29: #{tpu_custom_call.1} parent=1 // pred_fallthru
      _
    // Predicated region
    $region30: #{tpu_custom_call.1} parent=1 // pred_check
      _
    $region31: #{tpu_custom_call.1} parent=1 // pred_check_branch
      %30 = sbr.rel (0) target = $region33
    $region32: #{tpu_custom_call.1} parent=1 // pred_region
      _
    $region33: #{tpu_custom_call.1} parent=1 // pred_fallthru
      _
    // Predicated region
    $region34: #{tpu_custom_call.1} parent=1 // pred_check
      _
    $region35: #{tpu_custom_call.1} parent=1 // pred_check_branch
      %32 = sbr.rel (0) target = $region37
    $region36: #{tpu_custom_call.1} parent=1 // pred_region
      _
    $region37: #{tpu_custom_call.1} parent=1 // pred_fallthru
      _
    %v33 = vld [vmem:[%s0] sm:$0xff]
    %v34 = vld [vmem:[%s0 + $0x8] sm:$0xff]
    %v35 = vld [vmem:[%s0 + $0x10] sm:$0xff]
    %v36 = vld [vmem:[%s0 + $0x18] sm:$0xff]
    %v37 = vld [vmem:[%s0 + $0x20] sm:$0xff]
    %v38 = vld [vmem:[%s0 + $0x28] sm:$0xff]
    %v39 = vld [vmem:[%s0 + $0x30] sm:$0xff]
    %v40 = vld [vmem:[%s0 + $0x38] sm:$0xff]
    %v41 = vld [vmem:[%s0 + $0x40] sm:$0xff]
    %v42 = vld [vmem:[%s0 + $0x48] sm:$0xff]
    %v43 = vld [vmem:[%s0 + $0x50] sm:$0xff]
    %v44 = vld [vmem:[%s0 + $0x58] sm:$0xff]
    %v45 = vld [vmem:[%s0 + $0x60] sm:$0xff]
    %v46 = vld [vmem:[%s0 + $0x68] sm:$0xff]
    %v47 = vld [vmem:[%s0 + $0x70] sm:$0xff]
    %v48 = vld [vmem:[%s0 + $0x78] sm:$0xff]
    %v49 = vld [vmem:[%s1] sm:$0xff]
    %v50 = vld [vmem:[%s1 + $0x8] sm:$0xff]
    %v51 = vld [vmem:[%s1 + $0x10] sm:$0xff]
    %v52 = vld [vmem:[%s2] sm:$0xff]
    %v53 = vld [vmem:[%s2 + $0x8] sm:$0xff]
    %v54 = vld [vmem:[%s2 + $0x10] sm:$0xff]
    %56 = vset.pattern.permute.xlu0 0
    %57 = vperm.xlu0 %56, %v52
    %v58 = vpop.permute.xlu0 %57
    %61 = vset.pattern.permute.xlu0 0
    %62 = vperm.xlu0 %61, %v53
    %v63 = vpop.permute.xlu0 %62
    %66 = vset.pattern.permute.xlu0 0
    %67 = vperm.xlu0 %66, %v54
    %v68 = vpop.permute.xlu0 %67
    %vm70 = vcmask 261120
    %v72 = vsel %vm70, %v49, 0
    %v75 = vsel %vm70, %v50, 0
    %v78 = vsel %vm70, %v51, 0
    %v81 = vsel %vm70, %v33, 0
    %v84 = vsel %vm70, %v34, 0
    %v87 = vsel %vm70, %v35, 0
    %v90 = vsel %vm70, %v36, 0
    %v93 = vsel %vm70, %v37, 0
    %v96 = vsel %vm70, %v38, 0
    %v99 = vsel %vm70, %v39, 0
    %v102 = vsel %vm70, %v40, 0
    %v105 = vsel %vm70, %v41, 0
    %v108 = vsel %vm70, %v42, 0
    %v111 = vsel %vm70, %v43, 0
    %v114 = vsel %vm70, %v44, 0
    %v117 = vsel %vm70, %v45, 0
    %v120 = vsel %vm70, %v46, 0
    %v123 = vsel %vm70, %v47, 0
    %v126 = vsel %vm70, %v48, 0
    %128 = vmatprep.subr.mxu0 0.0
    %129 = vmatpush1.xpose.msra.mxu0 %v81
    %130 = vmatprep.subr.mxu0 0.0
    %131 = vmatpush1.xpose.msra.mxu0 %v84
    %132 = vmatprep.subr.mxu0 0.0
    %133 = vmatpush1.xpose.msra.mxu0 %v87
    %134 = vmatprep.subr.mxu0 0.0
    %135 = vmatpush1.xpose.msra.mxu0 %v90
    %136 = vmatprep.subr.mxu0 0.0
    %137 = vmatpush1.xpose.msra.mxu0 %v93
    %138 = vmatprep.subr.mxu0 0.0
    %139 = vmatpush1.xpose.msra.mxu0 %v96
    %140 = vmatprep.subr.mxu0 0.0
    %141 = vmatpush1.xpose.msra.mxu0 %v99
    %142 = vmatprep.subr.mxu0 0.0
    %143 = vmatpush1.xpose.msra.mxu0 %v102
    %144 = vmatprep.subr.mxu0 0.0
    %145 = vmatpush1.xpose.msra.mxu0 %v105
    %146 = vmatprep.subr.mxu0 0.0
    %147 = vmatpush1.xpose.msra.mxu0 %v108
    %148 = vmatprep.subr.mxu0 0.0
    %149 = vmatpush1.xpose.msra.mxu0 %v111
    %150 = vmatprep.subr.mxu0 0.0
    %151 = vmatpush1.xpose.msra.mxu0 %v114
    %152 = vmatprep.subr.mxu0 0.0
    %153 = vmatpush1.xpose.msra.mxu0 %v117
    %154 = vmatprep.subr.mxu0 0.0
    %155 = vmatpush1.xpose.msra.mxu0 %v120
    %156 = vmatprep.subr.mxu0 0.0
    %157 = vmatpush1.xpose.msra.mxu0 %v123
    %158 = vmatprep.subr.mxu0 0.0
    %159 = vmatpush1.xpose.msra.mxu0 %v126
    %160 = vmatprep.subr.mxu0 0.0
    %161 = vmatpush1.xpose.msra.mxu0 0.0
    %162 = vmatprep.subr.mxu0 0.0
    %163 = vmatpush1.xpose.msra.mxu0 0.0
    %164 = vmatprep.subr.mxu0 0.0
    %165 = vmatpush1.xpose.msra.mxu0 0.0
    %166 = vmatprep.subr.mxu0 0.0
    %167 = vmatpush1.xpose.msra.mxu0 0.0
    %168 = vmatprep.subr.mxu0 0.0
    %169 = vmatpush1.xpose.msra.mxu0 0.0
    %170 = vmatprep.subr.mxu0 0.0
    %171 = vmatpush1.xpose.msra.mxu0 0.0
    %172 = vmatprep.subr.mxu0 0.0
    %173 = vmatpush1.xpose.msra.mxu0 0.0
    %174 = vmatprep.subr.mxu0 0.0
    %175 = vmatpush1.xpose.msra.mxu0 0.0
    %176 = vmatprep.subr.mxu0 0.0
    %177 = vmatpush1.xpose.msra.mxu0 0.0
    %178 = vmatprep.subr.mxu0 0.0
    %179 = vmatpush1.xpose.msra.mxu0 0.0
    %180 = vmatprep.subr.mxu0 0.0
    %181 = vmatpush1.xpose.msra.mxu0 0.0
    %182 = vmatprep.subr.mxu0 0.0
    %183 = vmatpush1.xpose.msra.mxu0 0.0
    %184 = vmatprep.subr.mxu0 0.0
    %185 = vmatpush1.xpose.msra.mxu0 0.0
    %186 = vmatprep.subr.mxu0 0.0
    %187 = vmatpush1.xpose.msra.mxu0 0.0
    %188 = vmatprep.subr.mxu0 0.0
    %189 = vmatpush1.xpose.msra.mxu0 0.0
    %190 = vmatprep.subr.mxu0 0.0
    %191 = vmatpush1.xpose.msra.mxu0 0.0
    %192 = vmatprep.mubr.f32.mxu0 0.0
    %193 = vmatmul.mubr.f32.gmra.mrb[0].mxu0 %v72
    %v194 = vpop.f32.mrb[0].mxu0
    %v195 = vadd.f32 %v58, %v194
    %v196 = vpop.f32.mrb[0].mxu0
    %197 = vmatprep.mubr.f32.mxu0 0.0
    %198 = vmatmul.mubr.f32.gmra.mrb[0].mxu0 %v75
    %v199 = vpop.f32.mrb[0].mxu0
    %v200 = vadd.f32 %v63, %v199
    %v201 = vpop.f32.mrb[0].mxu0
    %202 = vmatprep.mubr.f32.mxu0 0.0
    %203 = vmatmul.mubr.f32.gmra.mrb[0].mxu0 %v78
    %v204 = vpop.f32.mrb[0].mxu0
    %v205 = vadd.f32 %v68, %v204
    %v206 = vpop.f32.mrb[0].mxu0
    %207 = vdwg.mxu0
    %v208 = vmax.f32 %v195, 0.0
    %v209 = vmax.f32 %v200, 0.0
    %v210 = vmax.f32 %v205, 0.0
    %v211 = vld [vmem:[%s3] sm:$0xff]
    %v212 = vld [vmem:[%s3 + $0x8] sm:$0xff]
    %v213 = vld [vmem:[%s3 + $0x10] sm:$0xff]
    %v214 = vld [vmem:[%s4] sm:$0xff]
    %v215 = vld [vmem:[%s4 + $0x8] sm:$0xff]
    %v216 = vld [vmem:[%s4 + $0x10] sm:$0xff]
    %218 = vset.pattern.permute.xlu0 0
    %219 = vperm.xlu0 %218, %v214
    %v220 = vpop.permute.xlu0 %219
    %223 = vset.pattern.permute.xlu0 0
    %224 = vperm.xlu0 %223, %v215
    %v225 = vpop.permute.xlu0 %224
    %228 = vset.pattern.permute.xlu0 0
    %229 = vperm.xlu0 %228, %v216
    %v230 = vpop.permute.xlu0 %229
    %vm232 = vcmask 195584
    %v234 = vsel %vm232, %v211, 0
    %v237 = vsel %vm232, %v212, 0
    %v240 = vsel %vm232, %v213, 0
    %242 = vmatprep.subr.mxu0 0.0
    %243 = vmatpush1.msra.mxu0 %v208
    %244 = vmatprep.subr.mxu0 0.0
    %245 = vmatpush1.msra.mxu0 %v209
    %246 = vmatprep.subr.mxu0 0.0
    %247 = vmatpush1.msra.mxu0 %v210
    %248 = vmatprep.subr.mxu0 0.0
    %249 = vmatpush1.msra.mxu0 0.0
    %250 = vmatprep.subr.mxu0 0.0
    %251 = vmatpush1.msra.mxu0 0.0
    %252 = vmatprep.subr.mxu0 0.0
    %253 = vmatpush1.msra.mxu0 0.0
    %254 = vmatprep.subr.mxu0 0.0
    %255 = vmatpush1.msra.mxu0 0.0
    %256 = vmatprep.subr.mxu0 0.0
    %257 = vmatpush1.msra.mxu0 0.0
    %258 = vmatprep.subr.mxu0 0.0
    %259 = vmatpush1.msra.mxu0 0.0
    %260 = vmatprep.subr.mxu0 0.0
    %261 = vmatpush1.msra.mxu0 0.0
    %262 = vmatprep.subr.mxu0 0.0
    %263 = vmatpush1.msra.mxu0 0.0
    %264 = vmatprep.subr.mxu0 0.0
    %265 = vmatpush1.msra.mxu0 0.0
    %266 = vmatprep.subr.mxu0 0.0
    %267 = vmatpush1.msra.mxu0 0.0
    %268 = vmatprep.subr.mxu0 0.0
    %269 = vmatpush1.msra.mxu0 0.0
    %270 = vmatprep.subr.mxu0 0.0
    %271 = vmatpush1.msra.mxu0 0.0
    %272 = vmatprep.subr.mxu0 0.0
    %273 = vmatpush1.msra.mxu0 0.0
    %274 = vmatprep.subr.mxu0 0.0
    %275 = vmatpush1.msra.mxu0 0.0
    %276 = vmatprep.subr.mxu0 0.0
    %277 = vmatpush1.msra.mxu0 0.0
    %278 = vmatprep.subr.mxu0 0.0
    %279 = vmatpush1.msra.mxu0 0.0
    %280 = vmatprep.subr.mxu0 0.0
    %281 = vmatpush1.msra.mxu0 0.0
    %282 = vmatprep.subr.mxu0 0.0
    %283 = vmatpush1.msra.mxu0 0.0
    %284 = vmatprep.subr.mxu0 0.0
    %285 = vmatpush1.msra.mxu0 0.0
    %286 = vmatprep.subr.mxu0 0.0
    %287 = vmatpush1.msra.mxu0 0.0
    %288 = vmatprep.subr.mxu0 0.0
    %289 = vmatpush1.msra.mxu0 0.0
    %290 = vmatprep.subr.mxu0 0.0
    %291 = vmatpush1.msra.mxu0 0.0
    %292 = vmatprep.subr.mxu0 0.0
    %293 = vmatpush1.msra.mxu0 0.0
    %294 = vmatprep.subr.mxu0 0.0
    %295 = vmatpush1.msra.mxu0 0.0
    %296 = vmatprep.subr.mxu0 0.0
    %297 = vmatpush1.msra.mxu0 0.0
    %298 = vmatprep.subr.mxu0 0.0
    %299 = vmatpush1.msra.mxu0 0.0
    %300 = vmatprep.subr.mxu0 0.0
    %301 = vmatpush1.msra.mxu0 0.0
    %302 = vmatprep.subr.mxu0 0.0
    %303 = vmatpush1.msra.mxu0 0.0
    %304 = vmatprep.subr.mxu0 0.0
    %305 = vmatpush1.msra.mxu0 0.0
    %306 = vmatprep.mubr.f32.mxu0 0.0
    %307 = vmatmul.mubr.f32.gmra.mrb[0].mxu0 %v234
    %v308 = vpop.f32.mrb[0].mxu0
    %v309 = vadd.f32 %v220, %v308
    %v310 = vpop.f32.mrb[0].mxu0
    %311 = vmatprep.mubr.f32.mxu0 0.0
    %312 = vmatmul.mubr.f32.gmra.mrb[0].mxu0 %v237
    %v313 = vpop.f32.mrb[0].mxu0
    %v314 = vadd.f32 %v225, %v313
    %v315 = vpop.f32.mrb[0].mxu0
    %316 = vmatprep.mubr.f32.mxu0 0.0
    %317 = vmatmul.mubr.f32.gmra.mrb[0].mxu0 %v240
    %v318 = vpop.f32.mrb[0].mxu0
    %v319 = vadd.f32 %v230, %v318
    %v320 = vpop.f32.mrb[0].mxu0
    %321 = vdwg.mxu0
    %v322 = vmax.f32 %v309, 0.0
    %v323 = vmax.f32 %v314, 0.0
    %v324 = vmax.f32 %v319, 0.0
    %v325 = vld [vmem:[%s5] sm:$0xff]
    %v326 = vld [vmem:[%s5 + $0x8] sm:$0xff]
    %v327 = vld [vmem:[%s5 + $0x10] sm:$0xff]
    %v328 = vld [vmem:[%s6] sm:$0xff]
    %v329 = vld [vmem:[%s6 + $0x8] sm:$0xff]
    %v330 = vld [vmem:[%s6 + $0x10] sm:$0xff]
    %332 = vset.pattern.permute.xlu0 0
    %333 = vperm.xlu0 %332, %v328
    %v334 = vpop.permute.xlu0 %333
    %337 = vset.pattern.permute.xlu0 0
    %338 = vperm.xlu0 %337, %v329
    %v339 = vpop.permute.xlu0 %338
    %342 = vset.pattern.permute.xlu0 0
    %343 = vperm.xlu0 %342, %v330
    %v344 = vpop.permute.xlu0 %343
    %v347 = vsel %vm232, %v325, 0
    %v350 = vsel %vm232, %v326, 0
    %v353 = vsel %vm232, %v327, 0
    %355 = vmatprep.subr.mxu0 0.0
    %356 = vmatpush1.msra.mxu0 %v322
    %357 = vmatprep.subr.mxu0 0.0
    %358 = vmatpush1.msra.mxu0 %v323
    %359 = vmatprep.subr.mxu0 0.0
    %360 = vmatpush1.msra.mxu0 %v324
    %361 = vmatprep.subr.mxu0 0.0
    %362 = vmatpush1.msra.mxu0 0.0
    %363 = vmatprep.subr.mxu0 0.0
    %364 = vmatpush1.msra.mxu0 0.0
    %365 = vmatprep.subr.mxu0 0.0
    %366 = vmatpush1.msra.mxu0 0.0
    %367 = vmatprep.subr.mxu0 0.0
    %368 = vmatpush1.msra.mxu0 0.0
    %369 = vmatprep.subr.mxu0 0.0
    %370 = vmatpush1.msra.mxu0 0.0
    %371 = vmatprep.subr.mxu0 0.0
    %372 = vmatpush1.msra.mxu0 0.0
    %373 = vmatprep.subr.mxu0 0.0
    %374 = vmatpush1.msra.mxu0 0.0
    %375 = vmatprep.subr.mxu0 0.0
    %376 = vmatpush1.msra.mxu0 0.0
    %377 = vmatprep.subr.mxu0 0.0
    %378 = vmatpush1.msra.mxu0 0.0
    %379 = vmatprep.subr.mxu0 0.0
    %380 = vmatpush1.msra.mxu0 0.0
    %381 = vmatprep.subr.mxu0 0.0
    %382 = vmatpush1.msra.mxu0 0.0
    %383 = vmatprep.subr.mxu0 0.0
    %384 = vmatpush1.msra.mxu0 0.0
    %385 = vmatprep.subr.mxu0 0.0
    %386 = vmatpush1.msra.mxu0 0.0
    %387 = vmatprep.subr.mxu0 0.0
    %388 = vmatpush1.msra.mxu0 0.0
    %389 = vmatprep.subr.mxu0 0.0
    %390 = vmatpush1.msra.mxu0 0.0
    %391 = vmatprep.subr.mxu0 0.0
    %392 = vmatpush1.msra.mxu0 0.0
    %393 = vmatprep.subr.mxu0 0.0
    %394 = vmatpush1.msra.mxu0 0.0
    %395 = vmatprep.subr.mxu0 0.0
    %396 = vmatpush1.msra.mxu0 0.0
    %397 = vmatprep.subr.mxu0 0.0
    %398 = vmatpush1.msra.mxu0 0.0
    %399 = vmatprep.subr.mxu0 0.0
    %400 = vmatpush1.msra.mxu0 0.0
    %401 = vmatprep.subr.mxu0 0.0
    %402 = vmatpush1.msra.mxu0 0.0
    %403 = vmatprep.subr.mxu0 0.0
    %404 = vmatpush1.msra.mxu0 0.0
    %405 = vmatprep.subr.mxu0 0.0
    %406 = vmatpush1.msra.mxu0 0.0
    %407 = vmatprep.subr.mxu0 0.0
    %408 = vmatpush1.msra.mxu0 0.0
    %409 = vmatprep.subr.mxu0 0.0
    %410 = vmatpush1.msra.mxu0 0.0
    %411 = vmatprep.subr.mxu0 0.0
    %412 = vmatpush1.msra.mxu0 0.0
    %413 = vmatprep.subr.mxu0 0.0
    %414 = vmatpush1.msra.mxu0 0.0
    %415 = vmatprep.subr.mxu0 0.0
    %416 = vmatpush1.msra.mxu0 0.0
    %417 = vmatprep.subr.mxu0 0.0
    %418 = vmatpush1.msra.mxu0 0.0
    %419 = vmatprep.mubr.f32.mxu0 0.0
    %420 = vmatmul.mubr.f32.gmra.mrb[0].mxu0 %v347
    %v421 = vpop.f32.mrb[0].mxu0
    %v422 = vadd.f32 %v334, %v421
    %v423 = vpop.f32.mrb[0].mxu0
    %424 = vmatprep.mubr.f32.mxu0 0.0
    %425 = vmatmul.mubr.f32.gmra.mrb[0].mxu0 %v350
    %v426 = vpop.f32.mrb[0].mxu0
    %v427 = vadd.f32 %v339, %v426
    %v428 = vpop.f32.mrb[0].mxu0
    %429 = vmatprep.mubr.f32.mxu0 0.0
    %430 = vmatmul.mubr.f32.gmra.mrb[0].mxu0 %v353
    %v431 = vpop.f32.mrb[0].mxu0
    %v432 = vadd.f32 %v344, %v431
    %v433 = vpop.f32.mrb[0].mxu0
    %434 = vdwg.mxu0
    %v435 = vmax.f32 %v422, 0.0
    %v436 = vmax.f32 %v427, 0.0
    %v437 = vmax.f32 %v432, 0.0
    %v438 = vld [vmem:[%s7] sm:$0xff]
    %v439 = vld [vmem:[%s7 + $0x8] sm:$0xff]
    %v440 = vld [vmem:[%s7 + $0x10] sm:$0xff]
    %v441 = vld [vmem:[%s8] sm:$0x1]
    %v443 = vlaneseq
    %v444 = vshrl.u32 %v443, 7
    %v445 = vsub.s32 0, %v444
    %v446 = vrot.slane %v441, %v445
    %448 = vxpose.xlu0.b32.start [1/16] %v435, 128
    %449 = vxpose.xlu0.b32.cont [2/16] %v436, 128
    %450 = vxpose.xlu0.b32.cont [3/16] %v437, 128
    %451 = vxpose.xlu0.b32.cont [4/16] 0.0, 128
    %452 = vxpose.xlu0.b32.cont [5/16] 0.0, 128
    %453 = vxpose.xlu0.b32.cont [6/16] 0.0, 128
    %454 = vxpose.xlu0.b32.cont [7/16] 0.0, 128
    %455 = vxpose.xlu0.b32.cont [8/16] 0.0, 128
    %456 = vxpose.xlu0.b32.cont [9/16] 0.0, 128
    %457 = vxpose.xlu0.b32.cont [10/16] 0.0, 128
    %458 = vxpose.xlu0.b32.cont [11/16] 0.0, 128
    %459 = vxpose.xlu0.b32.cont [12/16] 0.0, 128
    %460 = vxpose.xlu0.b32.cont [13/16] 0.0, 128
    %461 = vxpose.xlu0.b32.cont [14/16] 0.0, 128
    %462 = vxpose.xlu0.b32.cont [15/16] 0.0, 128
    %463 = vxpose.xlu0.b32.end [16/16] 0.0, 128
    %v464 = vpop.trf.xlu0
    %v465 = vpop.trf.xlu0
    %v466 = vpop.trf.xlu0
    %v467 = vpop.trf.xlu0
    %v468 = vpop.trf.xlu0
    %v469 = vpop.trf.xlu0
    %v470 = vpop.trf.xlu0
    %v471 = vpop.trf.xlu0
    %v472 = vpop.trf.xlu0
    %v473 = vpop.trf.xlu0
    %v474 = vpop.trf.xlu0
    %v475 = vpop.trf.xlu0
    %v476 = vpop.trf.xlu0
    %v477 = vpop.trf.xlu0
    %v478 = vpop.trf.xlu0
    %v479 = vpop.trf.xlu0
    %v481 = vsel %vm232, %v464, 0
    %v484 = vsel %vm232, %v465, 0
    %v487 = vsel %vm232, %v466, 0
    %v490 = vsel %vm232, %v467, 0
    %v493 = vsel %vm232, %v468, 0
    %v496 = vsel %vm232, %v469, 0
    %v499 = vsel %vm232, %v470, 0
    %v502 = vsel %vm232, %v471, 0
    %v505 = vsel %vm232, %v472, 0
    %v508 = vsel %vm232, %v473, 0
    %v511 = vsel %vm232, %v474, 0
    %v514 = vsel %vm232, %v475, 0
    %v517 = vsel %vm232, %v476, 0
    %v520 = vsel %vm232, %v477, 0
    %v523 = vsel %vm232, %v478, 0
    %v526 = vsel %vm232, %v479, 0
    %528 = vmatprep.subr.mxu0 0.0
    %529 = vmatpush1.msra.mxu0 %v438
    %530 = vmatprep.subr.mxu0 0.0
    %531 = vmatpush1.msra.mxu0 %v439
    %532 = vmatprep.subr.mxu0 0.0
    %533 = vmatpush1.msra.mxu0 %v440
    %534 = vmatprep.subr.mxu0 0.0
    %535 = vmatpush1.msra.mxu0 0.0
    %536 = vmatprep.subr.mxu0 0.0
    %537 = vmatpush1.msra.mxu0 0.0
    %538 = vmatprep.subr.mxu0 0.0
    %539 = vmatpush1.msra.mxu0 0.0
    %540 = vmatprep.subr.mxu0 0.0
    %541 = vmatpush1.msra.mxu0 0.0
    %542 = vmatprep.subr.mxu0 0.0
    %543 = vmatpush1.msra.mxu0 0.0
    %544 = vmatprep.subr.mxu0 0.0
    %545 = vmatpush1.msra.mxu0 0.0
    %546 = vmatprep.subr.mxu0 0.0
    %547 = vmatpush1.msra.mxu0 0.0
    %548 = vmatprep.subr.mxu0 0.0
    %549 = vmatpush1.msra.mxu0 0.0
    %550 = vmatprep.subr.mxu0 0.0
    %551 = vmatpush1.msra.mxu0 0.0
    %552 = vmatprep.subr.mxu0 0.0
    %553 = vmatpush1.msra.mxu0 0.0
    %554 = vmatprep.subr.mxu0 0.0
    %555 = vmatpush1.msra.mxu0 0.0
    %556 = vmatprep.subr.mxu0 0.0
    %557 = vmatpush1.msra.mxu0 0.0
    %558 = vmatprep.subr.mxu0 0.0
    %559 = vmatpush1.msra.mxu0 0.0
    %560 = vmatprep.subr.mxu0 0.0
    %561 = vmatpush1.msra.mxu0 0.0
    %562 = vmatprep.subr.mxu0 0.0
    %563 = vmatpush1.msra.mxu0 0.0
    %564 = vmatprep.subr.mxu0 0.0
    %565 = vmatpush1.msra.mxu0 0.0
    %566 = vmatprep.subr.mxu0 0.0
    %567 = vmatpush1.msra.mxu0 0.0
    %568 = vmatprep.subr.mxu0 0.0
    %569 = vmatpush1.msra.mxu0 0.0
    %570 = vmatprep.subr.mxu0 0.0
    %571 = vmatpush1.msra.mxu0 0.0
    %572 = vmatprep.subr.mxu0 0.0
    %573 = vmatpush1.msra.mxu0 0.0
    %574 = vmatprep.subr.mxu0 0.0
    %575 = vmatpush1.msra.mxu0 0.0
    %576 = vmatprep.subr.mxu0 0.0
    %577 = vmatpush1.msra.mxu0 0.0
    %578 = vmatprep.subr.mxu0 0.0
    %579 = vmatpush1.msra.mxu0 0.0
    %580 = vmatprep.subr.mxu0 0.0
    %581 = vmatpush1.msra.mxu0 0.0
    %582 = vmatprep.subr.mxu0 0.0
    %583 = vmatpush1.msra.mxu0 0.0
    %584 = vmatprep.subr.mxu0 0.0
    %585 = vmatpush1.msra.mxu0 0.0
    %586 = vmatprep.subr.mxu0 0.0
    %587 = vmatpush1.msra.mxu0 0.0
    %588 = vmatprep.subr.mxu0 0.0
    %589 = vmatpush1.msra.mxu0 0.0
    %590 = vmatprep.subr.mxu0 0.0
    %591 = vmatpush1.msra.mxu0 0.0
    %592 = vmatprep.mubr.f32.mxu0 0.0
    %593 = vmatmul.mubr.f32.gmra.mrb[0].mxu0 %v481
    %v594 = vpop.f32.mrb[0].mxu0
    %v595 = vadd.f32 %v446, %v594
    %v596 = vpop.f32.mrb[0].mxu0
    %597 = vmatprep.mubr.f32.mxu0 0.0
    %598 = vmatmul.mubr.f32.gmra.mrb[0].mxu0 %v484
    %v599 = vpop.f32.mrb[0].mxu0
    %v600 = vadd.f32 %v446, %v599
    %v601 = vpop.f32.mrb[0].mxu0
    %602 = vmatprep.mubr.f32.mxu0 0.0
    %603 = vmatmul.mubr.f32.gmra.mrb[0].mxu0 %v487
    %v604 = vpop.f32.mrb[0].mxu0
    %v605 = vadd.f32 %v446, %v604
    %v606 = vpop.f32.mrb[0].mxu0
    %607 = vmatprep.mubr.f32.mxu0 0.0
    %608 = vmatmul.mubr.f32.gmra.mrb[0].mxu0 %v490
    %v609 = vpop.f32.mrb[0].mxu0
    %v610 = vadd.f32 %v446, %v609
    %v611 = vpop.f32.mrb[0].mxu0
    %612 = vmatprep.mubr.f32.mxu0 0.0
    %613 = vmatmul.mubr.f32.gmra.mrb[0].mxu0 %v493
    %v614 = vpop.f32.mrb[0].mxu0
    %v615 = vadd.f32 %v446, %v614
    %v616 = vpop.f32.mrb[0].mxu0
    %617 = vmatprep.mubr.f32.mxu0 0.0
    %618 = vmatmul.mubr.f32.gmra.mrb[0].mxu0 %v496
    %v619 = vpop.f32.mrb[0].mxu0
    %v620 = vadd.f32 %v446, %v619
    %v621 = vpop.f32.mrb[0].mxu0
    %622 = vmatprep.mubr.f32.mxu0 0.0
    %623 = vmatmul.mubr.f32.gmra.mrb[0].mxu0 %v499
    %v624 = vpop.f32.mrb[0].mxu0
    %v625 = vadd.f32 %v446, %v624
    %v626 = vpop.f32.mrb[0].mxu0
    %627 = vmatprep.mubr.f32.mxu0 0.0
    %628 = vmatmul.mubr.f32.gmra.mrb[0].mxu0 %v502
    %v629 = vpop.f32.mrb[0].mxu0
    %v630 = vadd.f32 %v446, %v629
    %v631 = vpop.f32.mrb[0].mxu0
    %632 = vmatprep.mubr.f32.mxu0 0.0
    %633 = vmatmul.mubr.f32.gmra.mrb[0].mxu0 %v505
    %v634 = vpop.f32.mrb[0].mxu0
    %v635 = vadd.f32 %v446, %v634
    %v636 = vpop.f32.mrb[0].mxu0
    %637 = vmatprep.mubr.f32.mxu0 0.0
    %638 = vmatmul.mubr.f32.gmra.mrb[0].mxu0 %v508
    %v639 = vpop.f32.mrb[0].mxu0
    %v640 = vadd.f32 %v446, %v639
    %v641 = vpop.f32.mrb[0].mxu0
    %642 = vmatprep.mubr.f32.mxu0 0.0
    %643 = vmatmul.mubr.f32.gmra.mrb[0].mxu0 %v511
    %v644 = vpop.f32.mrb[0].mxu0
    %v645 = vadd.f32 %v446, %v644
    %v646 = vpop.f32.mrb[0].mxu0
    %647 = vmatprep.mubr.f32.mxu0 0.0
    %648 = vmatmul.mubr.f32.gmra.mrb[0].mxu0 %v514
    %v649 = vpop.f32.mrb[0].mxu0
    %v650 = vadd.f32 %v446, %v649
    %v651 = vpop.f32.mrb[0].mxu0
    %652 = vmatprep.mubr.f32.mxu0 0.0
    %653 = vmatmul.mubr.f32.gmra.mrb[0].mxu0 %v517
    %v654 = vpop.f32.mrb[0].mxu0
    %v655 = vadd.f32 %v446, %v654
    %v656 = vpop.f32.mrb[0].mxu0
    %657 = vmatprep.mubr.f32.mxu0 0.0
    %658 = vmatmul.mubr.f32.gmra.mrb[0].mxu0 %v520
    %v659 = vpop.f32.mrb[0].mxu0
    %v660 = vadd.f32 %v446, %v659
    %v661 = vpop.f32.mrb[0].mxu0
    %662 = vmatprep.mubr.f32.mxu0 0.0
    %663 = vmatmul.mubr.f32.gmra.mrb[0].mxu0 %v523
    %v664 = vpop.f32.mrb[0].mxu0
    %v665 = vadd.f32 %v446, %v664
    %v666 = vpop.f32.mrb[0].mxu0
    %667 = vmatprep.mubr.f32.mxu0 0.0
    %668 = vmatmul.mubr.f32.gmra.mrb[0].mxu0 %v526
    %v669 = vpop.f32.mrb[0].mxu0
    %v670 = vadd.f32 %v446, %v669
    %v671 = vpop.f32.mrb[0].mxu0
    %672 = vdwg.mxu0
    %vm673 = vcmask 64512
    %674 = vst.msk [vmem:[#allocation2] sm:$0xff] %vm673, %v595
    %675 = vst.msk [vmem:[#allocation2 + $0x8] sm:$0xff] %vm673, %v600
    %676 = vst.msk [vmem:[#allocation2 + $0x10] sm:$0xff] %vm673, %v605
    %677 = vst.msk [vmem:[#allocation2 + $0x18] sm:$0xff] %vm673, %v610
    %678 = vst.msk [vmem:[#allocation2 + $0x20] sm:$0xff] %vm673, %v615
    %679 = vst.msk [vmem:[#allocation2 + $0x28] sm:$0xff] %vm673, %v620
    %680 = vst.msk [vmem:[#allocation2 + $0x30] sm:$0xff] %vm673, %v625
    %681 = vst.msk [vmem:[#allocation2 + $0x38] sm:$0xff] %vm673, %v630
    %682 = vst.msk [vmem:[#allocation2 + $0x40] sm:$0xff] %vm673, %v635
    %683 = vst.msk [vmem:[#allocation2 + $0x48] sm:$0xff] %vm673, %v640
    %684 = vst.msk [vmem:[#allocation2 + $0x50] sm:$0xff] %vm673, %v645
    %685 = vst.msk [vmem:[#allocation2 + $0x58] sm:$0xff] %vm673, %v650
    %686 = vst.msk [vmem:[#allocation2 + $0x60] sm:$0xff] %vm673, %v655
    %687 = vst.msk [vmem:[#allocation2 + $0x68] sm:$0xff] %vm673, %v660
    %688 = vst.msk [vmem:[#allocation2 + $0x70] sm:$0xff] %vm673, %v665
    %689 = vst.msk [vmem:[#allocation2 + $0x78] sm:$0xff] %vm673, %v670
    // Predicated region
    $region38: #{tpu_custom_call.1} parent=1 // pred_check
      _
    $region39: #{tpu_custom_call.1} parent=1 // pred_check_branch
      %691 = sbr.rel (0) target = $region41
    $region40: #{tpu_custom_call.1} parent=1 // pred_region
      %s693 = ssub.s32 2048, 128
      %694 = vsyncadd [#allocation3], %s693
      %s695 = sshll.u32 [#allocation2], 4
      %s696 = int_to_ptr.vmem [resolvable:$true] %s695
      %701 = dma.vmem_to_hbm [thread:$0]  %s696, 128, %s9, [#allocation3], 128, 128, 8
    $region41: #{tpu_custom_call.1} parent=1 // pred_fallthru
      _
    // Predicated region
    $region42: #{tpu_custom_call.1} parent=1 // pred_check
      _
    $region43: #{tpu_custom_call.1} parent=1 // pred_check_branch
      %703 = sbr.rel (0) target = $region45
    $region44: #{tpu_custom_call.1} parent=1 // pred_region
      %704 = dma.done [#allocation3], 2048
    $region45: #{tpu_custom_call.1} parent=1 // pred_fallthru
      _
    %705 = vsyncpa [#allocation3], 1

</llo_original>
